<compile_context>
chip_gen: v5e
topology: v5e:2x2
jax: 0.10.0
libtpu: 0.0.40
codegen_flags: <defaults>
</compile_context>

<pallas_src>
import functools

import jax
import jax.numpy as jnp
import numpy as np
from jax import lax
from jax.experimental import pallas as pl
from jax.experimental.pallas import tpu as pltpu

# ---------------- problem sizes (small, consistent with the module) ----------------
B = 2          # batch
N = 64         # points per batch element
D_IN = 2       # input_dimensions (coordinate dimension)
D_EMB = 8      # embedding_dimenion
RANK = 4       # rank
INNER = 20     # inner_size (FeedForward hidden width, default 20)
# n_layers = 2  ->  FeedForward has 3 Linear layers: D_IN->INNER->INNER->2*RANK*D_EMB

LANE = 128     # TPU lane width; the points tile is always a multiple of this


def _round_up(a, b):
    return (a + b - 1) // b * b


def _cdiv(a, b):
    return -(-a // b)


# Bias pack: all four bias vectors live in one (BIAS_ROWS, 1) f32 slab at 8-sublane-aligned
# offsets (one DMA instead of four; keep offsets multiples of 8).
OFF_B1 = 0
OFF_B2 = _round_up(INNER, 8)                  # 24
OFF_B3 = OFF_B2 + _round_up(INNER, 8)         # 48
OFF_BNN = OFF_B3 + 2 * RANK * D_EMB           # 112
BIAS_ROWS = OFF_BNN + _round_up(D_EMB, 8)     # 120


# ---------------- generation-dependent tuning ----------------
def _detect_tuning():
    """Returns (max points-per-step lane tile, prefer >=2 even grid steps, hidden-act dtype)."""
    kind = ""
    try:
        kind = jax.devices()[0].device_kind.lower()
    except Exception:
        pass
    if "v7" in kind or "7x" in kind:
        # 2 TensorCores/chip, ~3.2 TB/s HBM, 64 MiB VMEM: big tiles, even grid >= 2.
        return 16384, True, jnp.bfloat16
    if "v6" in kind:
        # 1 TC, ~1.4 TB/s HBM, 128 MiB VMEM, bf16 VPU/EUP.
        return 8192, False, jnp.bfloat16
    # v5e (16 MiB scoped VMEM default, no bf16 VPU/EUP path) and unknown chips: conservative.
    return 8192, False, jnp.float32


MAX_TM, PREFER_TWO_STEPS, ACT_DTYPE = _detect_tuning()


def _pick_tile(m):
    """Points-per-step lane tile: as big as the generation allows, even grid >=2 on v7x."""
    tm = min(MAX_TM, _round_up(m, LANE))
    if PREFER_TWO_STEPS and m >= 2 * LANE:
        steps = _cdiv(m, tm)
        steps = max(2, steps + (steps & 1))               # even and >= 2
        tm = min(tm, _round_up(_cdiv(m, steps), LANE))
    return tm


# ---------------- Pallas kernel ----------------
def lowrank_kernel(x_ref, c_ref, w1_ref, w2_ref, w3_ref, wnn_ref, b_ref, o_ref,
                   *, rank, d_emb, inner, act_dtype):
    # x_ref : (TM, D_EMB) field values, f32, natural layout (points on sublanes)
    # c_ref : (TM, D_IN)  coordinates, f32, natural layout
    # w*_ref: bf16 weights (pre-transposed / rank-major-permuted / identity-augmented)
    # b_ref : (BIAS_ROWS, 1) f32 packed biases
    # o_ref : (D_EMB, TM) output, points on lanes (lane-dense store)
    f32 = jnp.float32
    bf16 = jnp.bfloat16
    # "NT" dims: A[o,k] . B[m,k] -> out[o,m]; lets us consume the natural-layout tiles
    # directly (no in-kernel or wrapper transposes of the big point tiles).
    nt = (((1,), (1,)), ((), ()))

    x_nat = x_ref[...].astype(bf16)            # (TM, D_EMB)
    c_nat = c_ref[...].astype(bf16)            # (TM, D_IN)

    # ---- basis feed-forward net: tanh(L1) -> tanh(L2) -> L3 (psi|phi heads fused) ----
    # bf16 MXU operands, f32 accumulation; hidden tanh in bf16 on v6e/v7x, f32 on v5e.
    h = lax.dot_general(w1_ref[...], c_nat, nt, preferred_element_type=f32)    # (INNER, TM)
    h = jnp.tanh((h + b_ref[OFF_B1:OFF_B1 + inner, :]).astype(act_dtype))
    h = jnp.dot(w2_ref[...], h.astype(bf16), preferred_element_type=f32)       # (INNER, TM)
    h = jnp.tanh((h + b_ref[OFF_B2:OFF_B2 + inner, :]).astype(act_dtype))
    basis = jnp.dot(w3_ref[...], h.astype(bf16), preferred_element_type=f32)   # (2RD, TM)
    basis = basis + b_ref[OFF_B3:OFF_B3 + 2 * rank * d_emb, :]                 # rank-major

    # ---- affine transform of the field + free transpose of x ----
    # wnn_ref = [Wnn ; I_D]: rows [0, D) give Wnn @ x^T, rows [D, 2D) give x^T itself
    # (bf16 values held in f32), so no explicit transpose op is ever emitted.
    t = lax.dot_general(wnn_ref[...], x_nat, nt, preferred_element_type=f32)   # (2D, TM)
    lin = t[:d_emb, :] + b_ref[OFF_BNN:OFF_BNN + d_emb, :]
    x_t = t[d_emb:2 * d_emb, :]                                                # (D_EMB, TM)

    # ---- low-rank expansion ----
    #   coeff[r, m]     = sum_d psi[r, d, m] * x[d, m]   (cheap sublane reduce, XLU)
    #   expansion[d, m] = sum_r coeff[r, m] * phi[r, d, m]
    expansion = jnp.zeros_like(x_t)
    for r in range(rank):
        psi_r = basis[r * d_emb:(r + 1) * d_emb, :]                    # (D_EMB, TM)
        phi_r = basis[(rank + r) * d_emb:(rank + r + 1) * d_emb, :]    # (D_EMB, TM)
        coeff_r = jnp.sum(psi_r * x_t, axis=0, keepdims=True)          # (1, TM)
        expansion = expansion + coeff_r * phi_r

    # ---- affine transform of the field + expansion, then activation (f32) ----
    o_ref[...] = jnp.tanh(lin + expansion).astype(o_ref.dtype)


# ---------------- one-time parameter preparation (hoisted out of the forward) --------
def prepare_params(params):
    """Permute/transpose/pack the torch-layout parameters once, outside the jitted path."""
    (w1, b1, w2, b2, w3, b3, wnn, bnn) = params

    # Column permutation so the fused basis output comes out rank-major:
    # row (r*D_EMB + d)            <- psi weight, torch column d*2*RANK + r
    # row (RANK*D_EMB + r*D_EMB+d) <- phi weight, torch column d*2*RANK + RANK + r
    d_idx = np.arange(D_EMB)
    r_idx = np.arange(RANK)
    psi_cols = (d_idx[None, :] * (2 * RANK) + r_idx[:, None]).reshape(-1)
    phi_cols = (d_idx[None, :] * (2 * RANK) + RANK + r_idx[:, None]).reshape(-1)
    perm = np.concatenate([psi_cols, phi_cols])

    w1k = jnp.asarray(np.asarray(w1).T, jnp.bfloat16)            # (INNER, D_IN)
    w2k = jnp.asarray(np.asarray(w2).T, jnp.bfloat16)            # (INNER, INNER)
    w3k = jnp.asarray(np.asarray(w3)[:, perm].T, jnp.bfloat16)   # (2*RANK*D_EMB, INNER)
    # torch Linear: y = x @ W^T + b -> y^T = W @ x^T + b, so Wnn is used as-is; the
    # appended identity block makes the same MXU pass emit x^T (points-on-lanes) for free.
    wnn_aug = np.concatenate([np.asarray(wnn, np.float32),
                              np.eye(D_EMB, dtype=np.float32)], axis=0)
    wnnk = jnp.asarray(wnn_aug, jnp.bfloat16)                    # (2*D_EMB, D_EMB)

    bias = np.zeros((BIAS_ROWS, 1), np.float32)
    bias[OFF_B1:OFF_B1 + INNER, 0] = np.asarray(b1)
    bias[OFF_B2:OFF_B2 + INNER, 0] = np.asarray(b2)
    bias[OFF_B3:OFF_B3 + 2 * RANK * D_EMB, 0] = np.asarray(b3)[perm]
    bias[OFF_BNN:OFF_BNN + D_EMB, 0] = np.asarray(bnn)
    return (w1k, w2k, w3k, wnnk, jnp.asarray(bias))


# ---------------- forward wrapper ----------------
def low_rank_block(x, coords, prep, *, act_dtype=jnp.float32):
    """x: (..., D_EMB), coords: (..., D_IN) -> (..., D_EMB)."""
    w1k, w2k, w3k, wnnk, bias = prep
    d = x.shape[-1]
    d_in = coords.shape[-1]
    m = int(np.prod(x.shape[:-1]))

    # Natural-layout views (free reshapes, no transposes / pads / slices in the wrapper;
    # ragged final tiles are handled by Pallas' partial-block masking).
    x2 = x.reshape(m, d)
    c2 = coords.reshape(m, d_in)

    tm = _pick_tile(m)
    steps = _cdiv(m, tm)

    full = lambda a: pl.BlockSpec(a.shape, lambda i: (0,) * a.ndim)
    kernel = functools.partial(lowrank_kernel, rank=RANK, d_emb=D_EMB, inner=INNER,
                               act_dtype=act_dtype)

    out = pl.pallas_call(
        kernel,
        out_shape=jax.ShapeDtypeStruct((d, m), x.dtype),
        grid_spec=pltpu.PrefetchScalarGridSpec(
            num_scalar_prefetch=0,
            grid=(steps,),
            in_specs=[
                pl.BlockSpec((tm, d), lambda i: (i, 0)),       # x, natural layout
                pl.BlockSpec((tm, d_in), lambda i: (i, 0)),    # coords, natural layout
                full(w1k), full(w2k), full(w3k), full(wnnk),   # bf16 weight slabs
                full(bias),                                    # packed f32 biases
            ],
            out_specs=pl.BlockSpec((d, tm), lambda i: (0, i)),  # lane-dense store
        ),
        compiler_params=pltpu.CompilerParams(dimension_semantics=("parallel",)),
    )(x2, c2, w1k, w2k, w3k, wnnk, bias)

    # The module contract is feature-last: this is the single remaining wrapper layout op.
    return jnp.transpose(out).reshape(x.shape)


# ---------------- pure-JAX reference (mirrors the torch forward) ----------------
def reference(x, coords, params, mxu_dtype=jnp.float32, act_dtype=jnp.float32):
    (w1, b1, w2, b2, w3, b3, wnn, bnn) = params
    f32 = jnp.float32
    dot = lambda a, b: jnp.dot(a.astype(mxu_dtype), b.astype(mxu_dtype),
                               preferred_element_type=f32)
    h = jnp.tanh((dot(coords, w1) + b1).astype(act_dtype)).astype(f32)
    h = jnp.tanh((dot(h, w2) + b2).astype(act_dtype)).astype(f32)
    basis = dot(h, w3) + b3
    basis = basis.reshape(basis.shape[:-1] + (D_EMB, 2 * RANK))
    psi = basis[..., :RANK]
    phi = basis[..., RANK:]
    # The kernel sees x through a bf16 MXU pass in the low-rank product; mirror that.
    x_lr = x.astype(mxu_dtype).astype(f32)
    coeff = jnp.einsum('...dr,...d->...r', psi, x_lr)
    expansion = jnp.einsum('...r,...dr->...d', coeff, phi)
    return jnp.tanh(dot(x, wnn.T) + bnn + expansion)


if __name__ == "__main__":
    key = jax.random.PRNGKey(0)
    ks = jax.random.split(key, 12)

    # deterministic synthetic parameters (shapes from __init__)
    w1 = jax.random.normal(ks[0], (D_IN, INNER), jnp.float32) * 0.3
    b1 = jax.random.normal(ks[1], (INNER,), jnp.float32) * 0.1
    w2 = jax.random.normal(ks[2], (INNER, INNER), jnp.float32) * 0.2
    b2 = jax.random.normal(ks[3], (INNER,), jnp.float32) * 0.1
    w3 = jax.random.normal(ks[4], (INNER, 2 * RANK * D_EMB), jnp.float32) * 0.2
    b3 = jax.random.normal(ks[5], (2 * RANK * D_EMB,), jnp.float32) * 0.1
    wnn = jax.random.normal(ks[6], (D_EMB, D_EMB), jnp.float32) * 0.3   # torch Linear weight (out, in)
    bnn = jax.random.normal(ks[7], (D_EMB,), jnp.float32) * 0.1
    params = (w1, b1, w2, b2, w3, b3, wnn, bnn)

    x = jax.random.normal(ks[8], (B, N, D_EMB), jnp.float32)
    coords = jax.random.normal(ks[9], (B, N, D_IN), jnp.float32)

    prep = prepare_params(params)            # one-time prep, outside the jitted forward

    # (1) f32-hidden-activation variant: tight check vs a matched-precision (bf16 MXU
    #     operands) reference, plus a sanity check vs the exact-f32 torch semantics.
    fwd_strict = jax.jit(functools.partial(low_rank_block, act_dtype=jnp.float32))
    out = jax.block_until_ready(fwd_strict(x, coords, prep))
    ref_match = reference(x, coords, params, mxu_dtype=jnp.bfloat16, act_dtype=jnp.float32)
    np.testing.assert_allclose(np.asarray(out), np.asarray(ref_match), rtol=2e-3, atol=2e-3)
    ref_f32 = reference(x, coords, params)   # exact f32 semantics (bounds the bf16 error)
    np.testing.assert_allclose(np.asarray(out), np.asarray(ref_f32), rtol=6e-2, atol=6e-2)

    # (2) generation-tuned variant (bf16 hidden tanh on v6e/v7x): looser tolerance, since
    #     the reference's bf16 tanh rounding may differ from the EUP's by ~1 ulp.
    fwd = jax.jit(functools.partial(low_rank_block, act_dtype=ACT_DTYPE))
    if ACT_DTYPE != jnp.float32:
        out_fast = jax.block_until_ready(fwd(x, coords, prep))
        ref_fast = reference(x, coords, params, mxu_dtype=jnp.bfloat16, act_dtype=ACT_DTYPE)
        np.testing.assert_allclose(np.asarray(out_fast), np.asarray(ref_fast),
                                   rtol=5e-2, atol=5e-2)

    # (3) larger, ragged point count: exercises the multi-step grid, the >=5-8K lane tile
    #     and the partial final tile (no wrapper-side padding / slicing).
    xb = jax.random.normal(ks[10], (4, 2500, D_EMB), jnp.float32)
    cb = jax.random.normal(ks[11], (4, 2500, D_IN), jnp.float32)
    outb = jax.block_until_ready(fwd(xb, cb, prep))
    refb = reference(xb, cb, params, mxu_dtype=jnp.bfloat16, act_dtype=ACT_DTYPE)
    tol = 2e-3 if ACT_DTYPE == jnp.float32 else 5e-2
    np.testing.assert_allclose(np.asarray(outb), np.asarray(refb), rtol=tol, atol=tol)

    print("KERNEL_OK")
</pallas_src>

<mosaic_0001>
module attributes {stable_mosaic.version = 11 : i64} {
  func.func @lowrank_kernel(%arg0: i32, %arg1: memref<128x8xf32, #tpu.memory_space<vmem>>, %arg2: memref<128x2xf32, #tpu.memory_space<vmem>>, %arg3: memref<20x2xbf16, #tpu.memory_space<vmem>>, %arg4: memref<20x20xbf16, #tpu.memory_space<vmem>>, %arg5: memref<64x20xbf16, #tpu.memory_space<vmem>>, %arg6: memref<16x8xbf16, #tpu.memory_space<vmem>>, %arg7: memref<120x1xf32, #tpu.memory_space<vmem>>, %arg8: memref<8x128xf32, #tpu.memory_space<vmem>>) attributes {dimension_semantics = [#tpu.dimension_semantics<parallel>], iteration_bounds = array<i64: 1>, scalar_prefetch = 0 : i64, scratch_operands = 0 : i64, tpu.core_type = #tpu.core_type<tc>, window_params = [{transform_indices = @transform_0, window_bounds = array<i64: 128, 8>}, {transform_indices = @transform_1, window_bounds = array<i64: 128, 2>}, {pipeline_mode = #tpu.pipeline_mode<synchronous>, transform_indices = @transform_2, window_bounds = array<i64: 20, 2>}, {pipeline_mode = #tpu.pipeline_mode<synchronous>, transform_indices = @transform_3, window_bounds = array<i64: 20, 20>}, {pipeline_mode = #tpu.pipeline_mode<synchronous>, transform_indices = @transform_4, window_bounds = array<i64: 64, 20>}, {pipeline_mode = #tpu.pipeline_mode<synchronous>, transform_indices = @transform_5, window_bounds = array<i64: 16, 8>}, {pipeline_mode = #tpu.pipeline_mode<synchronous>, transform_indices = @transform_6, window_bounds = array<i64: 120, 1>}, {transform_indices = @transform_7, window_bounds = array<i64: 8, 128>}]} {
    %c0 = arith.constant 0 : index
    %c0_0 = arith.constant 0 : index
    %0 = vector.load %arg1[%c0, %c0_0] : memref<128x8xf32, #tpu.memory_space<vmem>>, vector<128x8xf32>
    %1 = arith.truncf %0 : vector<128x8xf32> to vector<128x8xbf16>
    %c0_1 = arith.constant 0 : index
    %c0_2 = arith.constant 0 : index
    %2 = vector.load %arg2[%c0_1, %c0_2] : memref<128x2xf32, #tpu.memory_space<vmem>>, vector<128x2xf32>
    %3 = arith.truncf %2 : vector<128x2xf32> to vector<128x2xbf16>
    %c0_3 = arith.constant 0 : index
    %c0_4 = arith.constant 0 : index
    %4 = vector.load %arg3[%c0_3, %c0_4] : memref<20x2xbf16, #tpu.memory_space<vmem>>, vector<20x2xbf16>
    %cst = arith.constant dense<0.000000e+00> : vector<20x128xf32>
    %5 = tpu.matmul %4, %3, %cst {dimension_numbers = #tpu.dot_dimension_numbers<[1], [1], [0], [0], [0, 0, 1, 0], [], []>} : vector<20x2xbf16>, vector<128x2xbf16>, vector<20x128xf32> -> vector<20x128xf32>
    %c0_5 = arith.constant 0 : index
    %c0_6 = arith.constant 0 : index
    %6 = vector.load %arg7[%c0_5, %c0_6] : memref<120x1xf32, #tpu.memory_space<vmem>>, vector<20x1xf32>
    %7 = vector.broadcast %6 : vector<20x1xf32> to vector<20x128xf32>
    %8 = arith.addf %5, %7 : vector<20x128xf32>
    %9 = math.tanh %8 : vector<20x128xf32>
    %c0_7 = arith.constant 0 : index
    %c0_8 = arith.constant 0 : index
    %10 = vector.load %arg4[%c0_7, %c0_8] : memref<20x20xbf16, #tpu.memory_space<vmem>>, vector<20x20xbf16>
    %11 = arith.truncf %9 : vector<20x128xf32> to vector<20x128xbf16>
    %cst_9 = arith.constant dense<0.000000e+00> : vector<20x128xf32>
    %12 = tpu.matmul %10, %11, %cst_9 {dimension_numbers = #tpu.dot_dimension_numbers<[1], [0], [0], [1], [0, 0, 1, 1], [], []>} : vector<20x20xbf16>, vector<20x128xbf16>, vector<20x128xf32> -> vector<20x128xf32>
    %c24 = arith.constant 24 : index
    %c0_10 = arith.constant 0 : index
    %13 = vector.load %arg7[%c24, %c0_10] : memref<120x1xf32, #tpu.memory_space<vmem>>, vector<20x1xf32>
    %14 = vector.broadcast %13 : vector<20x1xf32> to vector<20x128xf32>
    %15 = arith.addf %12, %14 : vector<20x128xf32>
    %16 = math.tanh %15 : vector<20x128xf32>
    %c0_11 = arith.constant 0 : index
    %c0_12 = arith.constant 0 : index
    %17 = vector.load %arg5[%c0_11, %c0_12] : memref<64x20xbf16, #tpu.memory_space<vmem>>, vector<64x20xbf16>
    %18 = arith.truncf %16 : vector<20x128xf32> to vector<20x128xbf16>
    %cst_13 = arith.constant dense<0.000000e+00> : vector<64x128xf32>
    %19 = tpu.matmul %17, %18, %cst_13 {dimension_numbers = #tpu.dot_dimension_numbers<[1], [0], [0], [1], [0, 0, 1, 1], [], []>} : vector<64x20xbf16>, vector<20x128xbf16>, vector<64x128xf32> -> vector<64x128xf32>
    %c48 = arith.constant 48 : index
    %c0_14 = arith.constant 0 : index
    %20 = vector.load %arg7[%c48, %c0_14] : memref<120x1xf32, #tpu.memory_space<vmem>>, vector<64x1xf32>
    %21 = vector.broadcast %20 : vector<64x1xf32> to vector<64x128xf32>
    %22 = arith.addf %19, %21 : vector<64x128xf32>
    %c0_15 = arith.constant 0 : index
    %c0_16 = arith.constant 0 : index
    %23 = vector.load %arg6[%c0_15, %c0_16] : memref<16x8xbf16, #tpu.memory_space<vmem>>, vector<16x8xbf16>
    %cst_17 = arith.constant dense<0.000000e+00> : vector<16x128xf32>
    %24 = tpu.matmul %23, %1, %cst_17 {dimension_numbers = #tpu.dot_dimension_numbers<[1], [1], [0], [0], [0, 0, 1, 0], [], []>} : vector<16x8xbf16>, vector<128x8xbf16>, vector<16x128xf32> -> vector<16x128xf32>
    %25 = vector.extract_strided_slice %24 {offsets = [0, 0], sizes = [8, 128], strides = [1, 1]} : vector<16x128xf32> to vector<8x128xf32>
    %c112 = arith.constant 112 : index
    %c0_18 = arith.constant 0 : index
    %26 = vector.load %arg7[%c112, %c0_18] : memref<120x1xf32, #tpu.memory_space<vmem>>, vector<8x1xf32>
    %27 = vector.broadcast %26 : vector<8x1xf32> to vector<8x128xf32>
    %28 = arith.addf %25, %27 : vector<8x128xf32>
    %29 = vector.extract_strided_slice %24 {offsets = [8, 0], sizes = [8, 128], strides = [1, 1]} : vector<16x128xf32> to vector<8x128xf32>
    %cst_19 = arith.constant 0.000000e+00 : f32
    %30 = vector.broadcast %cst_19 : f32 to vector<8x128xf32>
    %31 = vector.extract_strided_slice %22 {offsets = [0, 0], sizes = [8, 128], strides = [1, 1]} : vector<64x128xf32> to vector<8x128xf32>
    %32 = vector.extract_strided_slice %22 {offsets = [32, 0], sizes = [8, 128], strides = [1, 1]} : vector<64x128xf32> to vector<8x128xf32>
    %33 = arith.mulf %31, %29 : vector<8x128xf32>
    %cst_20 = arith.constant dense<0.000000e+00> : vector<128xf32>
    %34 = vector.multi_reduction <add>, %33, %cst_20 [0] : vector<8x128xf32> to vector<128xf32>
    %35 = vector.shape_cast %34 : vector<128xf32> to vector<1x128xf32>
    %36 = vector.broadcast %35 : vector<1x128xf32> to vector<8x128xf32>
    %37 = arith.mulf %36, %32 : vector<8x128xf32>
    %38 = arith.addf %30, %37 : vector<8x128xf32>
    %39 = vector.extract_strided_slice %22 {offsets = [8, 0], sizes = [8, 128], strides = [1, 1]} : vector<64x128xf32> to vector<8x128xf32>
    %40 = vector.extract_strided_slice %22 {offsets = [40, 0], sizes = [8, 128], strides = [1, 1]} : vector<64x128xf32> to vector<8x128xf32>
    %41 = arith.mulf %39, %29 : vector<8x128xf32>
    %cst_21 = arith.constant dense<0.000000e+00> : vector<128xf32>
    %42 = vector.multi_reduction <add>, %41, %cst_21 [0] : vector<8x128xf32> to vector<128xf32>
    %43 = vector.shape_cast %42 : vector<128xf32> to vector<1x128xf32>
    %44 = vector.broadcast %43 : vector<1x128xf32> to vector<8x128xf32>
    %45 = arith.mulf %44, %40 : vector<8x128xf32>
    %46 = arith.addf %38, %45 : vector<8x128xf32>
    %47 = vector.extract_strided_slice %22 {offsets = [16, 0], sizes = [8, 128], strides = [1, 1]} : vector<64x128xf32> to vector<8x128xf32>
    %48 = vector.extract_strided_slice %22 {offsets = [48, 0], sizes = [8, 128], strides = [1, 1]} : vector<64x128xf32> to vector<8x128xf32>
    %49 = arith.mulf %47, %29 : vector<8x128xf32>
    %cst_22 = arith.constant dense<0.000000e+00> : vector<128xf32>
    %50 = vector.multi_reduction <add>, %49, %cst_22 [0] : vector<8x128xf32> to vector<128xf32>
    %51 = vector.shape_cast %50 : vector<128xf32> to vector<1x128xf32>
    %52 = vector.broadcast %51 : vector<1x128xf32> to vector<8x128xf32>
    %53 = arith.mulf %52, %48 : vector<8x128xf32>
    %54 = arith.addf %46, %53 : vector<8x128xf32>
    %55 = vector.extract_strided_slice %22 {offsets = [24, 0], sizes = [8, 128], strides = [1, 1]} : vector<64x128xf32> to vector<8x128xf32>
    %56 = vector.extract_strided_slice %22 {offsets = [56, 0], sizes = [8, 128], strides = [1, 1]} : vector<64x128xf32> to vector<8x128xf32>
    %57 = arith.mulf %55, %29 : vector<8x128xf32>
    %cst_23 = arith.constant dense<0.000000e+00> : vector<128xf32>
    %58 = vector.multi_reduction <add>, %57, %cst_23 [0] : vector<8x128xf32> to vector<128xf32>
    %59 = vector.shape_cast %58 : vector<128xf32> to vector<1x128xf32>
    %60 = vector.broadcast %59 : vector<1x128xf32> to vector<8x128xf32>
    %61 = arith.mulf %60, %56 : vector<8x128xf32>
    %62 = arith.addf %54, %61 : vector<8x128xf32>
    %63 = arith.addf %28, %62 : vector<8x128xf32>
    %64 = math.tanh %63 : vector<8x128xf32>
    %c0_24 = arith.constant 0 : index
    %c0_25 = arith.constant 0 : index
    %65 = vector.load %arg8[%c0_24, %c0_25] : memref<8x128xf32, #tpu.memory_space<vmem>>, vector<8x128xf32>
    tpu.vector_store %arg8[%c0_24, %c0_25], %64 {strides = array<i32>} : memref<8x128xf32, #tpu.memory_space<vmem>>, vector<8x128xf32>,
    return
  }
  func.func @transform_0(%arg0: i32) -> (i32, i32) {
    %c0_i32 = arith.constant 0 : i32
    %c0_i32_0 = arith.constant 0 : i32
    return %arg0, %c0_i32 : i32, i32
  }
  func.func @transform_1(%arg0: i32) -> (i32, i32) {
    %c0_i32 = arith.constant 0 : i32
    %c0_i32_0 = arith.constant 0 : i32
    return %arg0, %c0_i32 : i32, i32
  }
  func.func @transform_2(%arg0: i32) -> (i32, i32) {
    %c0_i32 = arith.constant 0 : i32
    %c0_i32_0 = arith.constant 0 : i32
    %c0_i32_1 = arith.constant 0 : i32
    return %c0_i32, %c0_i32_0 : i32, i32
  }
  func.func @transform_3(%arg0: i32) -> (i32, i32) {
    %c0_i32 = arith.constant 0 : i32
    %c0_i32_0 = arith.constant 0 : i32
    %c0_i32_1 = arith.constant 0 : i32
    return %c0_i32, %c0_i32_0 : i32, i32
  }
  func.func @transform_4(%arg0: i32) -> (i32, i32) {
    %c0_i32 = arith.constant 0 : i32
    %c0_i32_0 = arith.constant 0 : i32
    %c0_i32_1 = arith.constant 0 : i32
    return %c0_i32, %c0_i32_0 : i32, i32
  }
  func.func @transform_5(%arg0: i32) -> (i32, i32) {
    %c0_i32 = arith.constant 0 : i32
    %c0_i32_0 = arith.constant 0 : i32
    %c0_i32_1 = arith.constant 0 : i32
    return %c0_i32, %c0_i32_0 : i32, i32
  }
  func.func @transform_6(%arg0: i32) -> (i32, i32) {
    %c0_i32 = arith.constant 0 : i32
    %c0_i32_0 = arith.constant 0 : i32
    %c0_i32_1 = arith.constant 0 : i32
    return %c0_i32, %c0_i32_0 : i32, i32
  }
  func.func @transform_7(%arg0: i32) -> (i32, i32) {
    %c0_i32 = arith.constant 0 : i32
    %c0_i32_0 = arith.constant 0 : i32
    return %c0_i32, %arg0 : i32, i32
  }
}

</mosaic_0001>

<llo_original>
// kernel: low_rank_block.1
$region0: #{low_rank_block.1}
  #allocation0 [shape = 'u32[]', space=smem, size = 0x4, offset = 0x4, fixed_abs, tag = 'smem constant byte address 0x4 - core index']
  #allocation1 [shape = 'u32[72,128]{1,0:T(1,128)}', space=vmem, size = 0x9000, scoped, tag = 'internal scratch']
  %s0 = inlined_call_operand.vmem [shape: f32[128,8], index: 0, kind: input, shape index: {}]
  %s1 = inlined_call_operand.vmem [shape: f32[128,2], index: 1, kind: input, shape index: {}]
  %s2 = inlined_call_operand.vmem [shape: bf16[20,2], index: 2, kind: input, shape index: {}]
  %s3 = inlined_call_operand.vmem [shape: bf16[20,20], index: 3, kind: input, shape index: {}]
  %s4 = inlined_call_operand.vmem [shape: bf16[64,20], index: 4, kind: input, shape index: {}]
  %s5 = inlined_call_operand.vmem [shape: bf16[16,8], index: 5, kind: input, shape index: {}]
  %s6 = inlined_call_operand.vmem [shape: f32[120,1], index: 6, kind: input, shape index: {}]
  %s7 = inlined_call_operand.vmem [shape: f32[8,128], index: 7, kind: output, shape index: {}]
  %s8 = sld [smem:[#allocation0]]
  $region38: #{low_rank_block.1} parent=0
    _
  %s10 = ssub.s32 1, %s8
  %s11 = scalar_select 0, %s10, %s8
  // Predicated region
  $region2: #{low_rank_block.1} parent=0 // pred_check
    _
  $region3: #{low_rank_block.1} parent=0 // pred_check_branch
    %13 = sbr.rel (0) target = $region5
  $region4: #{low_rank_block.1} parent=0 // pred_region
    _
  $region5: #{low_rank_block.1} parent=0 // pred_fallthru
    _
  // Predicated region
  $region6: #{low_rank_block.1} parent=0 // pred_check
    _
  $region7: #{low_rank_block.1} parent=0 // pred_check_branch
    %15 = sbr.rel (0) target = $region9
  $region8: #{low_rank_block.1} parent=0 // pred_region
    _
  $region9: #{low_rank_block.1} parent=0 // pred_fallthru
    _
  // Predicated region
  $region10: #{low_rank_block.1} parent=0 // pred_check
    _
  $region11: #{low_rank_block.1} parent=0 // pred_check_branch
    %17 = sbr.rel (0) target = $region13
  $region12: #{low_rank_block.1} parent=0 // pred_region
    _
  $region13: #{low_rank_block.1} parent=0 // pred_fallthru
    _
  // Predicated region
  $region14: #{low_rank_block.1} parent=0 // pred_check
    _
  $region15: #{low_rank_block.1} parent=0 // pred_check_branch
    %19 = sbr.rel (0) target = $region17
  $region16: #{low_rank_block.1} parent=0 // pred_region
    _
  $region17: #{low_rank_block.1} parent=0 // pred_fallthru
    _
  // Predicated region
  $region18: #{low_rank_block.1} parent=0 // pred_check
    _
  $region19: #{low_rank_block.1} parent=0 // pred_check_branch
    %21 = sbr.rel (0) target = $region21
  $region20: #{low_rank_block.1} parent=0 // pred_region
    _
  $region21: #{low_rank_block.1} parent=0 // pred_fallthru
    _
  // Predicated region
  $region22: #{low_rank_block.1} parent=0 // pred_check
    _
  $region23: #{low_rank_block.1} parent=0 // pred_check_branch
    %23 = sbr.rel (0) target = $region25
  $region24: #{low_rank_block.1} parent=0 // pred_region
    _
  $region25: #{low_rank_block.1} parent=0 // pred_fallthru
    _
  // Predicated region
  $region26: #{low_rank_block.1} parent=0 // pred_check
    _
  $region27: #{low_rank_block.1} parent=0 // pred_check_branch
    %25 = sbr.rel (0) target = $region29
  $region28: #{low_rank_block.1} parent=0 // pred_region
    _
  $region29: #{low_rank_block.1} parent=0 // pred_fallthru
    _
  %v27 = vld [vmem:[%s0] sm:$0xff]
  %v28 = vld [vmem:[%s0 + $0x8] sm:$0xff]
  %v29 = vld [vmem:[%s0 + $0x10] sm:$0xff]
  %v30 = vld [vmem:[%s0 + $0x18] sm:$0xff]
  %v31 = vld [vmem:[%s0 + $0x20] sm:$0xff]
  %v32 = vld [vmem:[%s0 + $0x28] sm:$0xff]
  %v33 = vld [vmem:[%s0 + $0x30] sm:$0xff]
  %v34 = vld [vmem:[%s0 + $0x38] sm:$0xff]
  %v35 = vld [vmem:[%s0 + $0x40] sm:$0xff]
  %v36 = vld [vmem:[%s0 + $0x48] sm:$0xff]
  %v37 = vld [vmem:[%s0 + $0x50] sm:$0xff]
  %v38 = vld [vmem:[%s0 + $0x58] sm:$0xff]
  %v39 = vld [vmem:[%s0 + $0x60] sm:$0xff]
  %v40 = vld [vmem:[%s0 + $0x68] sm:$0xff]
  %v41 = vld [vmem:[%s0 + $0x70] sm:$0xff]
  %v42 = vld [vmem:[%s0 + $0x78] sm:$0xff]
  %v43 = vpack.c.bf16 %v28, %v27
  %v44 = vpack.c.bf16 %v30, %v29
  %v45 = vpack.c.bf16 %v32, %v31
  %v46 = vpack.c.bf16 %v34, %v33
  %v47 = vpack.c.bf16 %v36, %v35
  %v48 = vpack.c.bf16 %v38, %v37
  %v49 = vpack.c.bf16 %v40, %v39
  %v50 = vpack.c.bf16 %v42, %v41
  %v51 = vld [vmem:[%s1] sm:$0xff]
  %v52 = vld [vmem:[%s1 + $0x8] sm:$0xff]
  %v53 = vld [vmem:[%s1 + $0x10] sm:$0xff]
  %v54 = vld [vmem:[%s1 + $0x18] sm:$0xff]
  %v55 = vld [vmem:[%s1 + $0x20] sm:$0xff]
  %v56 = vld [vmem:[%s1 + $0x28] sm:$0xff]
  %v57 = vld [vmem:[%s1 + $0x30] sm:$0xff]
  %v58 = vld [vmem:[%s1 + $0x38] sm:$0xff]
  %v59 = vld [vmem:[%s1 + $0x40] sm:$0xff]
  %v60 = vld [vmem:[%s1 + $0x48] sm:$0xff]
  %v61 = vld [vmem:[%s1 + $0x50] sm:$0xff]
  %v62 = vld [vmem:[%s1 + $0x58] sm:$0xff]
  %v63 = vld [vmem:[%s1 + $0x60] sm:$0xff]
  %v64 = vld [vmem:[%s1 + $0x68] sm:$0xff]
  %v65 = vld [vmem:[%s1 + $0x70] sm:$0xff]
  %v66 = vld [vmem:[%s1 + $0x78] sm:$0xff]
  %v67 = vpack.c.bf16 %v52, %v51
  %v68 = vpack.c.bf16 %v54, %v53
  %v69 = vpack.c.bf16 %v56, %v55
  %v70 = vpack.c.bf16 %v58, %v57
  %v71 = vpack.c.bf16 %v60, %v59
  %v72 = vpack.c.bf16 %v62, %v61
  %v73 = vpack.c.bf16 %v64, %v63
  %v74 = vpack.c.bf16 %v66, %v65
  %v75 = vld [vmem:[%s2] sm:$0xf]
  %v76 = vld [vmem:[%s2 + $0x4] sm:$0xf]
  %v77 = vld [vmem:[%s2 + $0x8] sm:$0x3]
  %v78 = vld [vmem:[%s6] sm:$0xff]
  %v79 = vld [vmem:[%s6 + $0x8] sm:$0xff]
  %v80 = vld [vmem:[%s6 + $0x10] sm:$0xf]
  %82 = vset.pattern.permute.xlu0 0
  %83 = vperm.xlu0 %82, %v78
  %v84 = vpop.permute.xlu0 %83
  %87 = vset.pattern.permute.xlu0 0
  %88 = vperm.xlu0 %87, %v79
  %v89 = vpop.permute.xlu0 %88
  %92 = vset.pattern.permute.xlu0 0
  %93 = vperm.xlu0 %92, %v80
  %v94 = vpop.permute.xlu0 %93
  %v99 = vunpack.c.l.b16 %v75
  %v100 = vunpack.c.l.b16 %v76
  %v101 = vunpack.c.l.b16 %v77
  %v102 = vpack.c.b16 %v100, %v99
  %v103 = vpack.c.b16 %v101, %v101
  %vm104 = vcmask 15360
  %v106 = vsel %vm104, %v102, 0
  %v109 = vsel %vm104, %v103, 0
  %v112 = vsel %vm104, %v67, 0
  %v115 = vsel %vm104, %v68, 0
  %v118 = vsel %vm104, %v69, 0
  %v121 = vsel %vm104, %v70, 0
  %v124 = vsel %vm104, %v71, 0
  %v127 = vsel %vm104, %v72, 0
  %v130 = vsel %vm104, %v73, 0
  %v133 = vsel %vm104, %v74, 0
  %135 = vmatpush.bf16.xpose.msra.mxu0 %v133
  %136 = vmatpush.bf16.xpose.msra.mxu0 %v130
  %137 = vmatpush.bf16.xpose.msra.mxu0 %v127
  %138 = vmatpush.bf16.xpose.msra.mxu0 %v124
  %139 = vmatpush.bf16.xpose.msra.mxu0 %v121
  %140 = vmatpush.bf16.xpose.msra.mxu0 %v118
  %141 = vmatpush.bf16.xpose.msra.mxu0 %v115
  %142 = vmatpush.bf16.xpose.msra.mxu0 %v112
  %143 = vmatmul.bf16.gmra.mxu0 %v106
  %v144 = vpop.f32.mrf.mxu0
  %v145 = vadd.f32 %v84, %v144
  %v146 = vpop.f32.mrf.mxu0
  %v147 = vadd.f32 %v89, %v146
  %148 = vmatmul.bf16.gmra.mxu0 %v109
  %v149 = vpop.f32.mrf.mxu0
  %v150 = vadd.f32 %v94, %v149
  %v151 = vpop.f32.mrf.mxu0
  %152 = vdwg.mxu0
  %v153 = vtanh.pop %v145
  %v154 = vtanh.pop %v147
  %v155 = vtanh.pop %v150
  %v156 = vld [vmem:[%s3] sm:$0xf]
  %v157 = vld [vmem:[%s3 + $0x4] sm:$0xf]
  %v158 = vld [vmem:[%s3 + $0x8] sm:$0x3]
  %v159 = vpack.c.bf16 %v154, %v153
  %v160 = vpack.c.bf16 %v155, %v155
  %v161 = vld [vmem:[%s6 + $0x18] sm:$0xff]
  %v162 = vld [vmem:[%s6 + $0x20] sm:$0xff]
  %v163 = vld [vmem:[%s6 + $0x28] sm:$0xf]
  %165 = vset.pattern.permute.xlu0 0
  %166 = vperm.xlu0 %165, %v161
  %v167 = vpop.permute.xlu0 %166
  %170 = vset.pattern.permute.xlu0 0
  %171 = vperm.xlu0 %170, %v162
  %v172 = vpop.permute.xlu0 %171
  %175 = vset.pattern.permute.xlu0 0
  %176 = vperm.xlu0 %175, %v163
  %v177 = vpop.permute.xlu0 %176
  %v182 = vunpack.c.l.b16 %v156
  %v183 = vunpack.c.l.b16 %v157
  %v184 = vunpack.c.l.b16 %v158
  %v185 = vpack.c.b16 %v183, %v182
  %v186 = vpack.c.b16 %v184, %v184
  %vm187 = vcmask 162816
  %v189 = vsel %vm187, %v185, 0
  %v192 = vsel %vm187, %v186, 0
  %vm194 = vcmask 1041408
  %v196 = vsel %vm194, %v160, 0
  %198 = vmatpush.bf16.msra.mxu0 0
  %199 = vmatpush.bf16.msra.mxu0 0
  %200 = vmatpush.bf16.msra.mxu0 0
  %201 = vmatpush.bf16.msra.mxu0 0
  %202 = vmatpush.bf16.msra.mxu0 0
  %203 = vmatpush.bf16.msra.mxu0 0
  %204 = vmatpush.bf16.msra.mxu0 %v196
  %205 = vmatpush.bf16.msra.mxu0 %v159
  %206 = vmatmul.bf16.gmra.mxu0 %v189
  %v207 = vpop.f32.mrf.mxu0
  %v208 = vadd.f32 %v167, %v207
  %v209 = vpop.f32.mrf.mxu0
  %v210 = vadd.f32 %v172, %v209
  %211 = vmatmul.bf16.gmra.mxu0 %v192
  %v212 = vpop.f32.mrf.mxu0
  %v213 = vadd.f32 %v177, %v212
  %v214 = vpop.f32.mrf.mxu0
  %215 = vdwg.mxu0
  %v216 = vtanh.pop %v208
  %v217 = vtanh.pop %v210
  %v218 = vtanh.pop %v213
  %v219 = vld [vmem:[%s4] sm:$0xf]
  %v220 = vld [vmem:[%s4 + $0x4] sm:$0xf]
  %v221 = vld [vmem:[%s4 + $0x8] sm:$0xf]
  %v222 = vld [vmem:[%s4 + $0xc] sm:$0xf]
  %v223 = vld [vmem:[%s4 + $0x10] sm:$0xf]
  %v224 = vld [vmem:[%s4 + $0x14] sm:$0xf]
  %v225 = vld [vmem:[%s4 + $0x18] sm:$0xf]
  %v226 = vld [vmem:[%s4 + $0x1c] sm:$0xf]
  %v227 = vpack.c.bf16 %v217, %v216
  %v228 = vpack.c.bf16 %v218, %v218
  %v229 = vld [vmem:[%s6 + $0x30] sm:$0xff]
  %v230 = vld [vmem:[%s6 + $0x38] sm:$0xff]
  %v231 = vld [vmem:[%s6 + $0x40] sm:$0xff]
  %v232 = vld [vmem:[%s6 + $0x48] sm:$0xff]
  %v233 = vld [vmem:[%s6 + $0x50] sm:$0xff]
  %v234 = vld [vmem:[%s6 + $0x58] sm:$0xff]
  %v235 = vld [vmem:[%s6 + $0x60] sm:$0xff]
  %v236 = vld [vmem:[%s6 + $0x68] sm:$0xff]
  %238 = vset.pattern.permute.xlu0 0
  %239 = vperm.xlu0 %238, %v229
  %v240 = vpop.permute.xlu0 %239
  %243 = vset.pattern.permute.xlu0 0
  %244 = vperm.xlu0 %243, %v230
  %v245 = vpop.permute.xlu0 %244
  %248 = vset.pattern.permute.xlu0 0
  %249 = vperm.xlu0 %248, %v231
  %v250 = vpop.permute.xlu0 %249
  %253 = vset.pattern.permute.xlu0 0
  %254 = vperm.xlu0 %253, %v232
  %v255 = vpop.permute.xlu0 %254
  %258 = vset.pattern.permute.xlu0 0
  %259 = vperm.xlu0 %258, %v233
  %v260 = vpop.permute.xlu0 %259
  %263 = vset.pattern.permute.xlu0 0
  %264 = vperm.xlu0 %263, %v234
  %v265 = vpop.permute.xlu0 %264
  %268 = vset.pattern.permute.xlu0 0
  %269 = vperm.xlu0 %268, %v235
  %v270 = vpop.permute.xlu0 %269
  %273 = vset.pattern.permute.xlu0 0
  %274 = vperm.xlu0 %273, %v236
  %v275 = vpop.permute.xlu0 %274
  %v285 = vunpack.c.l.b16 %v219
  %v286 = vunpack.c.l.b16 %v220
  %v287 = vunpack.c.l.b16 %v221
  %v288 = vunpack.c.l.b16 %v222
  %v289 = vunpack.c.l.b16 %v223
  %v290 = vunpack.c.l.b16 %v224
  %v291 = vunpack.c.l.b16 %v225
  %v292 = vunpack.c.l.b16 %v226
  %v293 = vpack.c.b16 %v286, %v285
  %v294 = vpack.c.b16 %v288, %v287
  %v295 = vpack.c.b16 %v290, %v289
  %v296 = vpack.c.b16 %v292, %v291
  %v298 = vsel %vm187, %v293, 0
  %v301 = vsel %vm187, %v294, 0
  %v304 = vsel %vm187, %v295, 0
  %v307 = vsel %vm187, %v296, 0
  %v310 = vsel %vm194, %v228, 0
  %312 = vmatpush.bf16.msra.mxu0 0
  %313 = vmatpush.bf16.msra.mxu0 0
  %314 = vmatpush.bf16.msra.mxu0 0
  %315 = vmatpush.bf16.msra.mxu0 0
  %316 = vmatpush.bf16.msra.mxu0 0
  %317 = vmatpush.bf16.msra.mxu0 0
  %318 = vmatpush.bf16.msra.mxu0 %v310
  %319 = vmatpush.bf16.msra.mxu0 %v227
  %320 = vmatmul.bf16.gmra.mxu0 %v298
  %v321 = vpop.f32.mrf.mxu0
  %v322 = vadd.f32 %v240, %v321
  %v323 = vpop.f32.mrf.mxu0
  %v324 = vadd.f32 %v245, %v323
  %325 = vmatmul.bf16.gmra.mxu0 %v301
  %v326 = vpop.f32.mrf.mxu0
  %v327 = vadd.f32 %v250, %v326
  %v328 = vpop.f32.mrf.mxu0
  %v329 = vadd.f32 %v255, %v328
  %330 = vmatmul.bf16.gmra.mxu0 %v304
  %v331 = vpop.f32.mrf.mxu0
  %v332 = vadd.f32 %v260, %v331
  %v333 = vpop.f32.mrf.mxu0
  %v334 = vadd.f32 %v265, %v333
  %335 = vmatmul.bf16.gmra.mxu0 %v307
  %v336 = vpop.f32.mrf.mxu0
  %v337 = vadd.f32 %v270, %v336
  %v338 = vpop.f32.mrf.mxu0
  %v339 = vadd.f32 %v275, %v338
  %340 = vdwg.mxu0
  %v341 = vld [vmem:[%s5] sm:$0xf]
  %v342 = vld [vmem:[%s5 + $0x4] sm:$0xf]
  %v345 = vunpack.c.l.b16 %v341
  %v346 = vunpack.c.l.b16 %v342
  %v347 = vpack.c.b16 %v346, %v345
  %vm348 = vcmask 64512
  %v350 = vsel %vm348, %v347, 0
  %v353 = vsel %vm348, %v43, 0
  %v356 = vsel %vm348, %v44, 0
  %v359 = vsel %vm348, %v45, 0
  %v362 = vsel %vm348, %v46, 0
  %v365 = vsel %vm348, %v47, 0
  %v368 = vsel %vm348, %v48, 0
  %v371 = vsel %vm348, %v49, 0
  %v374 = vsel %vm348, %v50, 0
  %376 = vmatpush.bf16.xpose.msra.mxu0 %v374
  %377 = vmatpush.bf16.xpose.msra.mxu0 %v371
  %378 = vmatpush.bf16.xpose.msra.mxu0 %v368
  %379 = vmatpush.bf16.xpose.msra.mxu0 %v365
  %380 = vmatpush.bf16.xpose.msra.mxu0 %v362
  %381 = vmatpush.bf16.xpose.msra.mxu0 %v359
  %382 = vmatpush.bf16.xpose.msra.mxu0 %v356
  %383 = vmatpush.bf16.xpose.msra.mxu0 %v353
  %384 = vmatmul.bf16.gmra.mxu0 %v350
  %v385 = vpop.f32.mrf.mxu0
  %v386 = vadd.f32 0.0, %v385
  %v387 = vpop.f32.mrf.mxu0
  %v388 = vadd.f32 0.0, %v387
  %389 = vdwg.mxu0
  %v390 = vld [vmem:[%s6 + $0x70] sm:$0xff]
  %392 = vset.pattern.permute.xlu0 0
  %393 = vperm.xlu0 %392, %v390
  %v394 = vpop.permute.xlu0 %393
  %v396 = vadd.f32 %v386, %v394
  %v397 = vmul.f32 %v322, %v388
  %v398 = vrot.slane %v397, 4
  %v399 = vadd.f32 %v397, %v398
  %v400 = vrot.slane %v399, 2
  %v401 = vadd.f32 %v399, %v400
  %v402 = vrot.slane %v401, 1
  %v403 = vadd.f32 %v401, %v402
  %v404 = vmul.f32 %v403, %v332
  %v405 = vadd.f32 %v404, 0.0
  %v406 = vmul.f32 %v324, %v388
  %v407 = vrot.slane %v406, 4
  %v408 = vadd.f32 %v406, %v407
  %v409 = vrot.slane %v408, 2
  %v410 = vadd.f32 %v408, %v409
  %v411 = vrot.slane %v410, 1
  %v412 = vadd.f32 %v410, %v411
  %v413 = vmul.f32 %v412, %v334
  %v414 = vadd.f32 %v405, %v413
  %v415 = vmul.f32 %v327, %v388
  %v416 = vrot.slane %v415, 4
  %v417 = vadd.f32 %v415, %v416
  %v418 = vrot.slane %v417, 2
  %v419 = vadd.f32 %v417, %v418
  %v420 = vrot.slane %v419, 1
  %v421 = vadd.f32 %v419, %v420
  %v422 = vmul.f32 %v421, %v337
  %v423 = vadd.f32 %v414, %v422
  %v424 = vmul.f32 %v329, %v388
  %v425 = vrot.slane %v424, 4
  %v426 = vadd.f32 %v424, %v425
  %v427 = vrot.slane %v426, 2
  %v428 = vadd.f32 %v426, %v427
  %v429 = vrot.slane %v428, 1
  %v430 = vadd.f32 %v428, %v429
  %v431 = vmul.f32 %v430, %v339
  %v432 = vadd.f32 %v423, %v431
  %v433 = vadd.f32 %v396, %v432
  %v434 = vtanh.pop %v433
  %435 = vst [vmem:[%s7] sm:$0xff] %v434
  // Predicated region
  $region30: #{low_rank_block.1} parent=0 // pred_check
    _
  $region31: #{low_rank_block.1} parent=0 // pred_check_branch
    %437 = sbr.rel (0) target = $region33
  $region32: #{low_rank_block.1} parent=0 // pred_region
    _
  $region33: #{low_rank_block.1} parent=0 // pred_fallthru
    _
  // Predicated region
  $region34: #{low_rank_block.1} parent=0 // pred_check
    _
  $region35: #{low_rank_block.1} parent=0 // pred_check_branch
    %439 = sbr.rel (0) target = $region37
  $region36: #{low_rank_block.1} parent=0 // pred_region
    _
  $region37: #{low_rank_block.1} parent=0 // pred_fallthru
    _

</llo_original>
